<compile_context>
chip_gen: v7x
topology: tpu7x:2x2x1
jax: 0.10.0
libtpu: 0.0.40
codegen_flags: <defaults>
</compile_context>

<pallas_src>
import jax
import jax.numpy as jnp
from jax.experimental import pallas as pl
from jax.experimental.pallas import tpu as pltpu


def _round_up(x, m):
    return ((x + m - 1) // m) * m


def swiglu_kernel(x_ref, w12_ref, w2_ref, o_ref, acc_ref):
    h = pl.program_id(1)

    @pl.when(h == 0)
    def _():
        acc_ref[...] = jnp.zeros_like(acc_ref)

    x = x_ref[...]                                     # (tm, d_model)
    w12 = w12_ref[0]                                   # (d_model, 2*th): [gate | fc1]

    # One wide matmul covers both the gate and fc1 projections for this tile.
    gh = jnp.dot(x, w12, preferred_element_type=jnp.float32)    # (tm, 2*th) f32
    th = gh.shape[1] // 2
    g = gh[:, :th]
    hproj = gh[:, th:]

    # silu(g) * h   (sigmoid -> EUP, elementwise stays in f32)
    z = (g * jax.nn.sigmoid(g)) * hproj                # (tm, th) f32

    # Partial fc2 projection for this hidden tile, accumulated in f32.
    acc_ref[...] += jnp.dot(z.astype(w2_ref.dtype), w2_ref[...],
                            preferred_element_type=jnp.float32)

    @pl.when(h == pl.num_programs(1) - 1)
    def _():
        o_ref[...] = acc_ref[...].astype(o_ref.dtype)


def swiglu(x, gate_w_t, fc1_w_t, fc2_w_t, *, tm=256, th=512,
           vmem_limit_bytes=56 * 1024 * 1024):
    """SwiGLU forward.

    x: [..., d_model].  Weights pre-transposed to (in_features, out_features):
      gate_w_t, fc1_w_t: [d_model, hidden];  fc2_w_t: [hidden, d_model].
    """
    d_model = x.shape[-1]
    hidden = gate_w_t.shape[1]
    lead_shape = x.shape[:-1]

    x2d = x.reshape(-1, d_model)
    M = x2d.shape[0]

    # ---- row tiling: clamp tm to the (8-aligned) problem size, pad M up ----
    tm = max(8, (tm // 8) * 8)
    tm = min(tm, _round_up(M, 8))
    M_pad = _round_up(M, tm)
    if M_pad != M:
        x2d = jnp.pad(x2d, ((0, M_pad - M), (0, 0)))

    # ---- hidden tiling: full hidden if small, else lane-aligned tiles ----
    if hidden <= th:
        th = hidden
        H_pad = hidden
    else:
        th = max(128, (th // 128) * 128)
        H_pad = _round_up(hidden, th)

    if H_pad != hidden:
        pad_h = H_pad - hidden
        # Zero-padded hidden units contribute exactly zero to the output.
        gate_w_t = jnp.pad(gate_w_t, ((0, 0), (0, pad_h)))
        fc1_w_t = jnp.pad(fc1_w_t, ((0, 0), (0, pad_h)))
        fc2_w_t = jnp.pad(fc2_w_t, ((0, pad_h), (0, 0)))

    n_h = H_pad // th
    # Per-tile concat: tile t = [ gate[:, t*th:(t+1)*th] | fc1[:, t*th:(t+1)*th] ]
    w12 = jnp.concatenate(
        [gate_w_t.reshape(d_model, n_h, th).transpose(1, 0, 2),
         fc1_w_t.reshape(d_model, n_h, th).transpose(1, 0, 2)],
        axis=-1)                                        # (n_h, d_model, 2*th)

    out = pl.pallas_call(
        swiglu_kernel,
        out_shape=jax.ShapeDtypeStruct((M_pad, d_model), x.dtype),
        grid_spec=pltpu.PrefetchScalarGridSpec(
            num_scalar_prefetch=0,
            grid=(M_pad // tm, n_h),
            in_specs=[
                pl.BlockSpec((tm, d_model), lambda i, h: (i, 0)),            # X rows
                pl.BlockSpec((1, d_model, 2 * th), lambda i, h: (h, 0, 0)),  # [gate|fc1]
                pl.BlockSpec((th, d_model), lambda i, h: (h, 0)),            # fc2
            ],
            out_specs=pl.BlockSpec((tm, d_model), lambda i, h: (i, 0)),
            scratch_shapes=[pltpu.VMEM((tm, d_model), jnp.float32)],
        ),
        compiler_params=pltpu.CompilerParams(
            dimension_semantics=("parallel", "arbitrary"),
            vmem_limit_bytes=vmem_limit_bytes),
    )(x2d, w12, fc2_w_t)

    if M_pad != M:
        out = out[:M]
    return out.reshape(*lead_shape, d_model)


def init_swiglu_params(key, d_model, hidden_dim, dtype=jnp.float32):
    """Deterministic init mimicking nn.Linear default (uniform +-1/sqrt(fan_in)).

    Returns weights already transposed to (in_features, out_features).
    PyTorch nn.Linear weight shapes: fc1/gate -> (hidden, d_model), fc2 -> (d_model, hidden).
    """
    k1, k2, k3 = jax.random.split(key, 3)
    b_in = 1.0 / (d_model ** 0.5)
    b_h = 1.0 / (hidden_dim ** 0.5)
    fc1_w = jax.random.uniform(k1, (hidden_dim, d_model), dtype, -b_in, b_in)
    gate_w = jax.random.uniform(k2, (hidden_dim, d_model), dtype, -b_in, b_in)
    fc2_w = jax.random.uniform(k3, (d_model, hidden_dim), dtype, -b_h, b_h)
    return gate_w.T, fc1_w.T, fc2_w.T   # pre-transpose to (in, out)


def swiglu_ref(x, gate_w_t, fc1_w_t, fc2_w_t):
    g = x @ gate_w_t
    h = x @ fc1_w_t
    return (g * jax.nn.sigmoid(g) * h) @ fc2_w_t


if __name__ == "__main__":
    key = jax.random.PRNGKey(0)
    kx, kp, kx2, kp2 = jax.random.split(key, 4)

    # --- small shape consistent with the module: batch=2, seq=8, d_model=32, hidden=64
    batch, seq, d_model, hidden_dim = 2, 8, 32, 64
    x = jax.random.normal(kx, (batch, seq, d_model), dtype=jnp.float32)
    gate_w_t, fc1_w_t, fc2_w_t = init_swiglu_params(kp, d_model, hidden_dim)

    y = swiglu(x, gate_w_t, fc1_w_t, fc2_w_t)
    y = jax.block_until_ready(y)
    y_ref = swiglu_ref(x, gate_w_t, fc1_w_t, fc2_w_t)
    assert y.shape == (batch, seq, d_model)
    assert jnp.allclose(y, y_ref, atol=1e-4, rtol=1e-4), "mismatch vs reference (small)"

    # --- exercise the row-padding + multi-tile hidden accumulation path ---
    b2, s2, dm2, hd2 = 3, 7, 128, 384          # M=21 -> padded to 24; hidden tiled 3x128
    x2 = jax.random.normal(kx2, (b2, s2, dm2), dtype=jnp.float32)
    g2, f2, w2 = init_swiglu_params(kp2, dm2, hd2)
    y2 = jax.block_until_ready(swiglu(x2, g2, f2, w2, th=128))
    y2_ref = swiglu_ref(x2, g2, f2, w2)
    assert y2.shape == (b2, s2, dm2)
    assert jnp.allclose(y2, y2_ref, atol=1e-3, rtol=1e-2), "mismatch vs reference (tiled)"

    print("KERNEL_OK")
</pallas_src>

<mosaic_0001>
module attributes {stable_mosaic.version = 11 : i64} {
  func.func @swiglu_kernel(%arg0: i32, %arg1: i32, %arg2: memref<16x32xf32, #tpu.memory_space<vmem>>, %arg3: memref<1x32x128xf32, #tpu.memory_space<vmem>>, %arg4: memref<64x32xf32, #tpu.memory_space<vmem>>, %arg5: memref<16x32xf32, #tpu.memory_space<vmem>>, %arg6: memref<16x32xf32, #tpu.memory_space<vmem>>) attributes {dimension_semantics = [#tpu.dimension_semantics<parallel>, #tpu.dimension_semantics<arbitrary>], iteration_bounds = array<i64: 1, 1>, scalar_prefetch = 0 : i64, scratch_operands = 1 : i64, tpu.core_type = #tpu.core_type<tc>, window_params = [{transform_indices = @transform_0, window_bounds = array<i64: 16, 32>}, {transform_indices = @transform_1, window_bounds = array<i64: 1, 32, 128>}, {transform_indices = @transform_2, window_bounds = array<i64: 64, 32>}, {transform_indices = @transform_3, window_bounds = array<i64: 16, 32>}]} {
    %c0_i32 = arith.constant 0 : i32
    %0 = arith.cmpi eq, %arg1, %c0_i32 : i32
    %1 = arith.extui %0 : i1 to i32
    %c0_i32_0 = arith.constant 0 : i32
    %2 = arith.cmpi ne, %1, %c0_i32_0 : i32
    scf.if %2 {
      %cst_15 = arith.constant 0.000000e+00 : f32
      %24 = vector.broadcast %cst_15 : f32 to vector<16x32xf32>
      %c0_16 = arith.constant 0 : index
      %c0_17 = arith.constant 0 : index
      %25 = vector.load %arg6[%c0_16, %c0_17] : memref<16x32xf32, #tpu.memory_space<vmem>>, vector<16x32xf32>
      tpu.vector_store %arg6[%c0_16, %c0_17], %24 {strides = array<i32>} : memref<16x32xf32, #tpu.memory_space<vmem>>, vector<16x32xf32>,
    } else {
    }
    %c0 = arith.constant 0 : index
    %c0_1 = arith.constant 0 : index
    %3 = vector.load %arg2[%c0, %c0_1] : memref<16x32xf32, #tpu.memory_space<vmem>>, vector<16x32xf32>
    %c0_2 = arith.constant 0 : index
    %c0_3 = arith.constant 0 : index
    %c0_4 = arith.constant 0 : index
    %4 = vector.load %arg3[%c0_2, %c0_3, %c0_4] : memref<1x32x128xf32, #tpu.memory_space<vmem>>, vector<1x32x128xf32>
    %5 = vector.shape_cast %4 : vector<1x32x128xf32> to vector<32x128xf32>
    %cst = arith.constant dense<0.000000e+00> : vector<16x128xf32>
    %6 = tpu.matmul %3, %5, %cst {dimension_numbers = #tpu.dot_dimension_numbers<[1], [0], [0], [1], [0, 0, 1, 1], [], []>} : vector<16x32xf32>, vector<32x128xf32>, vector<16x128xf32> -> vector<16x128xf32>
    %7 = vector.extract_strided_slice %6 {offsets = [0, 0], sizes = [16, 64], strides = [1, 1]} : vector<16x128xf32> to vector<16x64xf32>
    %8 = vector.extract_strided_slice %6 {offsets = [0, 64], sizes = [16, 64], strides = [1, 1]} : vector<16x128xf32> to vector<16x64xf32>
    %9 = arith.negf %7 : vector<16x64xf32>
    %10 = math.exp %9 : vector<16x64xf32>
    %cst_5 = arith.constant 1.000000e+00 : f32
    %11 = vector.broadcast %cst_5 : f32 to vector<16x64xf32>
    %12 = arith.addf %11, %10 : vector<16x64xf32>
    %13 = arith.divf %11, %12 : vector<16x64xf32>
    %14 = arith.mulf %7, %13 : vector<16x64xf32>
    %15 = arith.mulf %14, %8 : vector<16x64xf32>
    %c0_6 = arith.constant 0 : index
    %c0_7 = arith.constant 0 : index
    %16 = vector.load %arg6[%c0_6, %c0_7] : memref<16x32xf32, #tpu.memory_space<vmem>>, vector<16x32xf32>
    %c0_8 = arith.constant 0 : index
    %c0_9 = arith.constant 0 : index
    %17 = vector.load %arg4[%c0_8, %c0_9] : memref<64x32xf32, #tpu.memory_space<vmem>>, vector<64x32xf32>
    %cst_10 = arith.constant dense<0.000000e+00> : vector<16x32xf32>
    %18 = tpu.matmul %15, %17, %cst_10 {dimension_numbers = #tpu.dot_dimension_numbers<[1], [0], [0], [1], [0, 0, 1, 1], [], []>} : vector<16x64xf32>, vector<64x32xf32>, vector<16x32xf32> -> vector<16x32xf32>
    %19 = arith.addf %16, %18 : vector<16x32xf32>
    %c0_11 = arith.constant 0 : index
    %c0_12 = arith.constant 0 : index
    %20 = vector.load %arg6[%c0_11, %c0_12] : memref<16x32xf32, #tpu.memory_space<vmem>>, vector<16x32xf32>
    tpu.vector_store %arg6[%c0_11, %c0_12], %19 {strides = array<i32>} : memref<16x32xf32, #tpu.memory_space<vmem>>, vector<16x32xf32>,
    %c0_i32_13 = arith.constant 0 : i32
    %21 = arith.cmpi eq, %arg1, %c0_i32_13 : i32
    %22 = arith.extui %21 : i1 to i32
    %c0_i32_14 = arith.constant 0 : i32
    %23 = arith.cmpi ne, %22, %c0_i32_14 : i32
    scf.if %23 {
      %c0_15 = arith.constant 0 : index
      %c0_16 = arith.constant 0 : index
      %24 = vector.load %arg6[%c0_15, %c0_16] : memref<16x32xf32, #tpu.memory_space<vmem>>, vector<16x32xf32>
      %c0_17 = arith.constant 0 : index
      %c0_18 = arith.constant 0 : index
      %25 = vector.load %arg5[%c0_17, %c0_18] : memref<16x32xf32, #tpu.memory_space<vmem>>, vector<16x32xf32>
      tpu.vector_store %arg5[%c0_17, %c0_18], %24 {strides = array<i32>} : memref<16x32xf32, #tpu.memory_space<vmem>>, vector<16x32xf32>,
    } else {
    }
    return
  }
  func.func @transform_0(%arg0: i32, %arg1: i32) -> (i32, i32) {
    %c0_i32 = arith.constant 0 : i32
    %c0_i32_0 = arith.constant 0 : i32
    return %arg0, %c0_i32 : i32, i32
  }
  func.func @transform_1(%arg0: i32, %arg1: i32) -> (i32, i32, i32) {
    %c0_i32 = arith.constant 0 : i32
    %c0_i32_0 = arith.constant 0 : i32
    %c0_i32_1 = arith.constant 0 : i32
    return %arg1, %c0_i32, %c0_i32_0 : i32, i32, i32
  }
  func.func @transform_2(%arg0: i32, %arg1: i32) -> (i32, i32) {
    %c0_i32 = arith.constant 0 : i32
    %c0_i32_0 = arith.constant 0 : i32
    return %arg1, %c0_i32 : i32, i32
  }
  func.func @transform_3(%arg0: i32, %arg1: i32) -> (i32, i32) {
    %c0_i32 = arith.constant 0 : i32
    %c0_i32_0 = arith.constant 0 : i32
    return %arg0, %c0_i32 : i32, i32
  }
}

</mosaic_0001>

<llo_original>
// kernel: tpu_custom_call.1
$region0: #{tpu_custom_call.1}
  #allocation0 [shape = 'u32[]', space=smem, size = 0x4, offset = 0x4, fixed_abs, tag = 'smem constant byte address 0x4 - core index']
  #allocation1 [shape = 'u32[144,128]{1,0:T(1,128)}', space=vmem, size = 0x12000, scoped, tag = 'internal scratch']
  #allocation2 [shape = 'f32[16,32]{1,0:T(8,128)}', space=vmem, size = 0x2000, scoped, tag = 'scratch operand']
  %s0 = inlined_call_operand.vmem [shape: f32[16,32], index: 0, kind: input, shape index: {}]
  %s1 = inlined_call_operand.vmem [shape: f32[1,32,128], index: 1, kind: input, shape index: {}]
  %s2 = inlined_call_operand.vmem [shape: f32[64,32], index: 2, kind: input, shape index: {}]
  %s3 = inlined_call_operand.hbm [shape: f32[16,32], index: 3, kind: output, shape index: {}]
  %s4 = sld [smem:[#allocation0]]
  $region30: #{tpu_custom_call.1} parent=0
    _
  %s6 = ssub.s32 1, %s4
  %s7 = scalar_select 0, %s6, %s4
  $region1: #{tpu_custom_call.1} parent=0
    #allocation3 [shape = 'u8[8192]{0}', space=vmem, size = 0x2000, scoped, tag = 'output window, operand 0, single buffered']
    #allocation4 [shape = 's32[1]{0}', space=sflag, size = 0x4, scoped, tag = 'scoped memory for tpu_custom_call.1']
    %8 = vsyncpa [#allocation4], 0
    // Predicated region
    $region2: #{tpu_custom_call.1} parent=1 // pred_check
      _
    $region3: #{tpu_custom_call.1} parent=1 // pred_check_branch
      %10 = sbr.rel (0) target = $region5
    $region4: #{tpu_custom_call.1} parent=1 // pred_region
      _
    $region5: #{tpu_custom_call.1} parent=1 // pred_fallthru
      _
    // Predicated region
    $region6: #{tpu_custom_call.1} parent=1 // pred_check
      _
    $region7: #{tpu_custom_call.1} parent=1 // pred_check_branch
      %12 = sbr.rel (0) target = $region9
    $region8: #{tpu_custom_call.1} parent=1 // pred_region
      _
    $region9: #{tpu_custom_call.1} parent=1 // pred_fallthru
      _
    // Predicated region
    $region10: #{tpu_custom_call.1} parent=1 // pred_check
      _
    $region11: #{tpu_custom_call.1} parent=1 // pred_check_branch
      %14 = sbr.rel (0) target = $region13
    $region12: #{tpu_custom_call.1} parent=1 // pred_region
      _
    $region13: #{tpu_custom_call.1} parent=1 // pred_fallthru
      _
    %p15 = scmp.eq.s32.totalorder 0, 0
    // Predicated region
    $region14: #{tpu_custom_call.1} parent=1 // pred_check
      %p16 = pneg %p15
    $region15: #{tpu_custom_call.1} parent=1 // pred_check_branch
      %18 = sbr.rel (%p16) target = $region17
    $region16: #{tpu_custom_call.1} parent=1 // pred_region
      %vm19 = vcmask 261120
      %20 = vst.msk [vmem:[#allocation2] sm:$0xff] %vm19, 0.0
      %21 = vst.msk [vmem:[#allocation2 + $0x8] sm:$0xff] %vm19, 0.0
    $region17: #{tpu_custom_call.1} parent=1 // pred_fallthru
      _
    %v22 = vld [vmem:[%s0] sm:$0xff]
    %v23 = vld [vmem:[%s0 + $0x8] sm:$0xff]
    %v24 = vld [vmem:[%s1] sm:$0xff]
    %v25 = vld [vmem:[%s1 + $0x8] sm:$0xff]
    %v26 = vld [vmem:[%s1 + $0x10] sm:$0xff]
    %v27 = vld [vmem:[%s1 + $0x18] sm:$0xff]
    %vm28 = vcmask 261120
    %v30 = vsel %vm28, %v22, 0
    %v33 = vsel %vm28, %v23, 0
    %35 = vmatprep.subr.mxu0 0.0
    %36 = vmatpush1.msra.mxu0 %v24
    %37 = vmatprep.subr.mxu0 0.0
    %38 = vmatpush1.msra.mxu0 %v25
    %39 = vmatprep.subr.mxu0 0.0
    %40 = vmatpush1.msra.mxu0 %v26
    %41 = vmatprep.subr.mxu0 0.0
    %42 = vmatpush1.msra.mxu0 %v27
    %43 = vmatprep.subr.mxu0 0.0
    %44 = vmatpush1.msra.mxu0 0.0
    %45 = vmatprep.subr.mxu0 0.0
    %46 = vmatpush1.msra.mxu0 0.0
    %47 = vmatprep.subr.mxu0 0.0
    %48 = vmatpush1.msra.mxu0 0.0
    %49 = vmatprep.subr.mxu0 0.0
    %50 = vmatpush1.msra.mxu0 0.0
    %51 = vmatprep.subr.mxu0 0.0
    %52 = vmatpush1.msra.mxu0 0.0
    %53 = vmatprep.subr.mxu0 0.0
    %54 = vmatpush1.msra.mxu0 0.0
    %55 = vmatprep.subr.mxu0 0.0
    %56 = vmatpush1.msra.mxu0 0.0
    %57 = vmatprep.subr.mxu0 0.0
    %58 = vmatpush1.msra.mxu0 0.0
    %59 = vmatprep.subr.mxu0 0.0
    %60 = vmatpush1.msra.mxu0 0.0
    %61 = vmatprep.subr.mxu0 0.0
    %62 = vmatpush1.msra.mxu0 0.0
    %63 = vmatprep.subr.mxu0 0.0
    %64 = vmatpush1.msra.mxu0 0.0
    %65 = vmatprep.subr.mxu0 0.0
    %66 = vmatpush1.msra.mxu0 0.0
    %67 = vmatprep.subr.mxu0 0.0
    %68 = vmatpush1.msra.mxu0 0.0
    %69 = vmatprep.subr.mxu0 0.0
    %70 = vmatpush1.msra.mxu0 0.0
    %71 = vmatprep.subr.mxu0 0.0
    %72 = vmatpush1.msra.mxu0 0.0
    %73 = vmatprep.subr.mxu0 0.0
    %74 = vmatpush1.msra.mxu0 0.0
    %75 = vmatprep.subr.mxu0 0.0
    %76 = vmatpush1.msra.mxu0 0.0
    %77 = vmatprep.subr.mxu0 0.0
    %78 = vmatpush1.msra.mxu0 0.0
    %79 = vmatprep.subr.mxu0 0.0
    %80 = vmatpush1.msra.mxu0 0.0
    %81 = vmatprep.subr.mxu0 0.0
    %82 = vmatpush1.msra.mxu0 0.0
    %83 = vmatprep.subr.mxu0 0.0
    %84 = vmatpush1.msra.mxu0 0.0
    %85 = vmatprep.subr.mxu0 0.0
    %86 = vmatpush1.msra.mxu0 0.0
    %87 = vmatprep.subr.mxu0 0.0
    %88 = vmatpush1.msra.mxu0 0.0
    %89 = vmatprep.subr.mxu0 0.0
    %90 = vmatpush1.msra.mxu0 0.0
    %91 = vmatprep.subr.mxu0 0.0
    %92 = vmatpush1.msra.mxu0 0.0
    %93 = vmatprep.subr.mxu0 0.0
    %94 = vmatpush1.msra.mxu0 0.0
    %95 = vmatprep.subr.mxu0 0.0
    %96 = vmatpush1.msra.mxu0 0.0
    %97 = vmatprep.subr.mxu0 0.0
    %98 = vmatpush1.msra.mxu0 0.0
    %99 = vmatprep.mubr.f32.mxu0 0.0
    %100 = vmatmul.mubr.f32.gmra.mrb[0].mxu0 %v30
    %v101 = vpop.f32.mrb[0].mxu0
    %v102 = vadd.f32 0.0, %v101
    %v103 = vpop.f32.mrb[0].mxu0
    %104 = vmatprep.mubr.f32.mxu0 0.0
    %105 = vmatmul.mubr.f32.gmra.mrb[0].mxu0 %v33
    %v106 = vpop.f32.mrb[0].mxu0
    %v107 = vadd.f32 0.0, %v106
    %v108 = vpop.f32.mrb[0].mxu0
    %109 = vdwg.mxu0
    %v110 = vxor.u32 %v102, 2147483648
    %v111 = vxor.u32 %v107, 2147483648
    %v112 = vmul.f32 %v110, 1.442695
    %v113 = vpow.pop %v112
    %v114 = vmul.f32 %v111, 1.442695
    %v115 = vpow.pop %v114
    %v116 = vadd.f32 %v113, 1.0
    %v117 = vadd.f32 %v115, 1.0
    %v118 = vrcp.pop %v116
    %v119 = vmul.f32 1.0, %v118
    %v120 = vrcp.pop %v117
    %v121 = vmul.f32 1.0, %v120
    %v122 = vmul.f32 %v102, %v119
    %v123 = vmul.f32 %v107, %v121
    %126 = vrot.lane.b32.xlu0 %v102, 64
    %v127 = vpop.permute.xlu0 %126
    %128 = vrot.lane.b32.xlu0 %v107, 64
    %v129 = vpop.permute.xlu0 %128
    %v132 = vmul.f32 %v122, %v127
    %v133 = vmul.f32 %v123, %v129
    %v134 = vld [vmem:[#allocation2] sm:$0xff]
    %v135 = vld [vmem:[#allocation2 + $0x8] sm:$0xff]
    %v136 = vld [vmem:[%s2] sm:$0xff]
    %v137 = vld [vmem:[%s2 + $0x8] sm:$0xff]
    %v138 = vld [vmem:[%s2 + $0x10] sm:$0xff]
    %v139 = vld [vmem:[%s2 + $0x18] sm:$0xff]
    %v140 = vld [vmem:[%s2 + $0x20] sm:$0xff]
    %v141 = vld [vmem:[%s2 + $0x28] sm:$0xff]
    %v142 = vld [vmem:[%s2 + $0x30] sm:$0xff]
    %v143 = vld [vmem:[%s2 + $0x38] sm:$0xff]
    %vm144 = vcmask 523264
    %v146 = vsel %vm144, %v132, 0
    %v149 = vsel %vm144, %v133, 0
    %151 = vmatprep.subr.mxu0 0.0
    %152 = vmatpush1.msra.mxu0 %v136
    %153 = vmatprep.subr.mxu0 0.0
    %154 = vmatpush1.msra.mxu0 %v137
    %155 = vmatprep.subr.mxu0 0.0
    %156 = vmatpush1.msra.mxu0 %v138
    %157 = vmatprep.subr.mxu0 0.0
    %158 = vmatpush1.msra.mxu0 %v139
    %159 = vmatprep.subr.mxu0 0.0
    %160 = vmatpush1.msra.mxu0 %v140
    %161 = vmatprep.subr.mxu0 0.0
    %162 = vmatpush1.msra.mxu0 %v141
    %163 = vmatprep.subr.mxu0 0.0
    %164 = vmatpush1.msra.mxu0 %v142
    %165 = vmatprep.subr.mxu0 0.0
    %166 = vmatpush1.msra.mxu0 %v143
    %167 = vmatprep.subr.mxu0 0.0
    %168 = vmatpush1.msra.mxu0 0.0
    %169 = vmatprep.subr.mxu0 0.0
    %170 = vmatpush1.msra.mxu0 0.0
    %171 = vmatprep.subr.mxu0 0.0
    %172 = vmatpush1.msra.mxu0 0.0
    %173 = vmatprep.subr.mxu0 0.0
    %174 = vmatpush1.msra.mxu0 0.0
    %175 = vmatprep.subr.mxu0 0.0
    %176 = vmatpush1.msra.mxu0 0.0
    %177 = vmatprep.subr.mxu0 0.0
    %178 = vmatpush1.msra.mxu0 0.0
    %179 = vmatprep.subr.mxu0 0.0
    %180 = vmatpush1.msra.mxu0 0.0
    %181 = vmatprep.subr.mxu0 0.0
    %182 = vmatpush1.msra.mxu0 0.0
    %183 = vmatprep.subr.mxu0 0.0
    %184 = vmatpush1.msra.mxu0 0.0
    %185 = vmatprep.subr.mxu0 0.0
    %186 = vmatpush1.msra.mxu0 0.0
    %187 = vmatprep.subr.mxu0 0.0
    %188 = vmatpush1.msra.mxu0 0.0
    %189 = vmatprep.subr.mxu0 0.0
    %190 = vmatpush1.msra.mxu0 0.0
    %191 = vmatprep.subr.mxu0 0.0
    %192 = vmatpush1.msra.mxu0 0.0
    %193 = vmatprep.subr.mxu0 0.0
    %194 = vmatpush1.msra.mxu0 0.0
    %195 = vmatprep.subr.mxu0 0.0
    %196 = vmatpush1.msra.mxu0 0.0
    %197 = vmatprep.subr.mxu0 0.0
    %198 = vmatpush1.msra.mxu0 0.0
    %199 = vmatprep.subr.mxu0 0.0
    %200 = vmatpush1.msra.mxu0 0.0
    %201 = vmatprep.subr.mxu0 0.0
    %202 = vmatpush1.msra.mxu0 0.0
    %203 = vmatprep.subr.mxu0 0.0
    %204 = vmatpush1.msra.mxu0 0.0
    %205 = vmatprep.subr.mxu0 0.0
    %206 = vmatpush1.msra.mxu0 0.0
    %207 = vmatprep.subr.mxu0 0.0
    %208 = vmatpush1.msra.mxu0 0.0
    %209 = vmatprep.subr.mxu0 0.0
    %210 = vmatpush1.msra.mxu0 0.0
    %211 = vmatprep.subr.mxu0 0.0
    %212 = vmatpush1.msra.mxu0 0.0
    %213 = vmatprep.subr.mxu0 0.0
    %214 = vmatpush1.msra.mxu0 0.0
    %215 = vmatprep.mubr.f32.mxu0 0.0
    %216 = vmatmul.mubr.f32.gmra.mrb[0].mxu0 %v146
    %v217 = vpop.f32.mrb[0].mxu0
    %v218 = vadd.f32 0.0, %v217
    %v219 = vpop.f32.mrb[0].mxu0
    %220 = vmatprep.mubr.f32.mxu0 0.0
    %221 = vmatmul.mubr.f32.gmra.mrb[0].mxu0 %v149
    %v222 = vpop.f32.mrb[0].mxu0
    %v223 = vadd.f32 0.0, %v222
    %v224 = vpop.f32.mrb[0].mxu0
    %225 = vdwg.mxu0
    %v226 = vadd.f32 %v134, %v218
    %v227 = vadd.f32 %v135, %v223
    %228 = vst.msk [vmem:[#allocation2] sm:$0xff] %vm28, %v226
    %229 = vst.msk [vmem:[#allocation2 + $0x8] sm:$0xff] %vm28, %v227
    // Predicated region
    $region18: #{tpu_custom_call.1} parent=1 // pred_check
      %p230 = pneg %p15
    $region19: #{tpu_custom_call.1} parent=1 // pred_check_branch
      %232 = sbr.rel (%p230) target = $region21
    $region20: #{tpu_custom_call.1} parent=1 // pred_region
      %v233 = vld [vmem:[#allocation2] sm:$0xff]
      %v234 = vld [vmem:[#allocation2 + $0x8] sm:$0xff]
      %235 = vst.msk [vmem:[#allocation3] sm:$0xff] %vm28, %v233
      %236 = vst.msk [vmem:[#allocation3 + $0x8] sm:$0xff] %vm28, %v234
    $region21: #{tpu_custom_call.1} parent=1 // pred_fallthru
      _
    // Predicated region
    $region22: #{tpu_custom_call.1} parent=1 // pred_check
      _
    $region23: #{tpu_custom_call.1} parent=1 // pred_check_branch
      %238 = sbr.rel (0) target = $region25
    $region24: #{tpu_custom_call.1} parent=1 // pred_region
      %s240 = ssub.s32 256, 256
      %241 = vsyncadd [#allocation4], %s240
      %s242 = sshll.u32 [#allocation3], 4
      %s243 = int_to_ptr.vmem [resolvable:$true] %s242
      %248 = dma.vmem_to_hbm [thread:$0]  %s243, 256, %s3, [#allocation4], 128, 128, 8
    $region25: #{tpu_custom_call.1} parent=1 // pred_fallthru
      _
    // Predicated region
    $region26: #{tpu_custom_call.1} parent=1 // pred_check
      _
    $region27: #{tpu_custom_call.1} parent=1 // pred_check_branch
      %250 = sbr.rel (0) target = $region29
    $region28: #{tpu_custom_call.1} parent=1 // pred_region
      %251 = dma.done [#allocation4], 256
    $region29: #{tpu_custom_call.1} parent=1 // pred_fallthru
      _
    %252 = vsyncpa [#allocation4], 1

</llo_original>
